<compile_context>
chip_gen: v6e
topology: v6e:2x2x1
jax: 0.10.0
libtpu: 0.0.40
codegen_flags: <defaults>
</compile_context>

<pallas_src>
import functools

import jax
import jax.numpy as jnp
from jax.experimental import pallas as pl
from jax.experimental.pallas import tpu as pltpu


def _round_up(n, m):
    return ((n + m - 1) // m) * m


def _coupling_kernel(x_ref, mask_ref,
                     w1_ref, b1_ref, w2_ref, b2_ref,
                     w3_ref, b3_ref, w4_ref, b4_ref,
                     o_ref, *, invert):
    """Whole coupling-layer hot path: masking + 4-layer MLP + recombination."""
    x = x_ref[...]                       # (TB, Dp) f32
    mask = mask_ref[...]                 # (1, Dp)  f32, broadcasts over batch
    inv_mask = 1.0 - mask
    x1 = mask * x                        # masked half fed to the MLP (f32)

    def leaky_relu(h):
        # single VALU max instead of compare+select
        return jnp.maximum(h, 0.2 * h)

    def dense(h, w_ref, b_ref):
        # bf16 operands on the MXU, f32 accumulation, bias add in f32.
        return jnp.dot(h.astype(jnp.bfloat16), w_ref[...],
                       preferred_element_type=jnp.float32) + b_ref[...]

    h = leaky_relu(dense(x1, w1_ref, b1_ref))
    h = leaky_relu(dense(h, w2_ref, b2_ref))
    h = leaky_relu(dense(h, w3_ref, b3_ref))
    m_out = dense(h, w4_ref, b4_ref)

    # mask*x + (1-mask)*x == x, so the coupling reduces to x +/- m(x1)*(1-mask).
    # Sign is resolved at trace time (no runtime multiply).
    if invert:
        o_ref[...] = x - m_out * inv_mask
    else:
        o_ref[...] = x + m_out * inv_mask


def coupling_layer(x, logdet, mask, params, *, invert=False, tile_b=None):
    """Pallas-backed CouplingLayer.forward.

    x:      [B, D] float32
    logdet: any array, returned unchanged
    mask:   [1, D] float32
    params: dict with w1[D,H], b1[1,H], w2[H,H], b2[1,H],
                      w3[H,H], b3[1,H], w4[H,D], b4[1,D]
    Weights are stored [in, out] so y = x @ W + b (== PyTorch x @ W_pt.T + b).
    """
    B, D = x.shape
    H = params["w1"].shape[1]

    # ---- lane-dense padding: features / hidden up to multiples of 128 -------
    Dp = _round_up(D, 128)
    Hp = _round_up(H, 128)

    # ---- batch tiling: large tiles, whole batch in one step when B is small -
    Bp = _round_up(B, 8)
    if tile_b is None:
        tile_b = min(Bp, 256)

    # bf16 weights (double-buffered alloc) + f32 biases/mask
    weight_vmem = 2 * ((Dp * Hp + 2 * Hp * Hp + Hp * Dp) * 2
                       + (3 * Hp + 2 * Dp) * 4)

    def _vmem_bytes(tb):
        io_vmem = 2 * 2 * tb * Dp * 4          # x / out tiles, double-buffered
        act_vmem = 8 * tb * Hp * 4             # MLP intermediates headroom
        return weight_vmem + io_vmem + act_vmem

    # Cap tile_b so the budget stays well inside v7x's 64 MiB per-TC VMEM.
    while tile_b > 8 and _vmem_bytes(tile_b) > 48 * 1024 * 1024:
        tile_b //= 2
    tile_b = max(8, _round_up(tile_b, 8))
    Bp = _round_up(Bp, tile_b)

    vmem_limit = int(min(max(2 * _vmem_bytes(tile_b), 4 * 1024 * 1024),
                         64 * 1024 * 1024))

    # ---- pad operands (zero padding is exact: padded lanes contribute 0) ----
    f32 = jnp.float32
    pad2 = lambda a, r, c: jnp.pad(a.astype(f32),
                                   ((0, r - a.shape[0]), (0, c - a.shape[1])))

    xp = pad2(x, Bp, Dp)
    maskp = pad2(mask, 1, Dp)
    w1 = pad2(params["w1"], Dp, Hp).astype(jnp.bfloat16)
    w2 = pad2(params["w2"], Hp, Hp).astype(jnp.bfloat16)
    w3 = pad2(params["w3"], Hp, Hp).astype(jnp.bfloat16)
    w4 = pad2(params["w4"], Hp, Dp).astype(jnp.bfloat16)
    b1 = pad2(params["b1"], 1, Hp)
    b2 = pad2(params["b2"], 1, Hp)
    b3 = pad2(params["b3"], 1, Hp)
    b4 = pad2(params["b4"], 1, Dp)

    kernel = functools.partial(_coupling_kernel, invert=bool(invert))

    const = lambda shape: pl.BlockSpec(shape, lambda i: (0, 0))

    flops = 2 * Bp * (Dp * Hp + 2 * Hp * Hp + Hp * Dp)
    bytes_accessed = ((Dp * Hp + 2 * Hp * Hp + Hp * Dp) * 2     # bf16 weights
                      + (3 * Hp + 2 * Dp) * 4                   # biases + mask
                      + 2 * Bp * Dp * 4)                        # x in, out
    cost = pl.CostEstimate(flops=flops, transcendentals=0,
                           bytes_accessed=bytes_accessed)

    out = pl.pallas_call(
        kernel,
        out_shape=jax.ShapeDtypeStruct((Bp, Dp), jnp.float32),
        grid_spec=pltpu.PrefetchScalarGridSpec(
            num_scalar_prefetch=0,
            grid=(Bp // tile_b,),
            in_specs=[
                pl.BlockSpec((tile_b, Dp), lambda i: (i, 0)),   # x tile
                const((1, Dp)),                                 # mask
                const((Dp, Hp)), const((1, Hp)),                # layer 1
                const((Hp, Hp)), const((1, Hp)),                # layer 2
                const((Hp, Hp)), const((1, Hp)),                # layer 3
                const((Hp, Dp)), const((1, Dp)),                # layer 4
            ],
            out_specs=pl.BlockSpec((tile_b, Dp), lambda i: (i, 0)),
        ),
        compiler_params=pltpu.CompilerParams(
            dimension_semantics=("parallel",),
            vmem_limit_bytes=vmem_limit),
        cost_estimate=cost,
    )(xp, maskp, w1, b1, w2, b2, w3, b3, w4, b4)

    return out[:B, :D], logdet


def _reference(x, logdet, mask, params, invert=False, bf16_matmul=True):
    """Pure-JAX reference mirroring the PyTorch module (optionally with the
    same bf16-operand / f32-accumulate matmul policy as the kernel)."""
    def leaky_relu(h):
        return jnp.maximum(h, 0.2 * h)

    def dense(h, w, b):
        if bf16_matmul:
            return jnp.dot(h.astype(jnp.bfloat16), w.astype(jnp.bfloat16),
                           preferred_element_type=jnp.float32) + b
        return jnp.dot(h, w, preferred_element_type=jnp.float32) + b

    def mlp(h):
        h = leaky_relu(dense(h, params["w1"], params["b1"]))
        h = leaky_relu(dense(h, params["w2"], params["b2"]))
        h = leaky_relu(dense(h, params["w3"], params["b3"]))
        return dense(h, params["w4"], params["b4"])

    x1, x2 = mask * x, (1.0 - mask) * x
    if not invert:
        y2 = x2 + mlp(x1) * (1.0 - mask)
    else:
        y2 = x2 - mlp(x1) * (1.0 - mask)
    return x1 + y2, logdet


if __name__ == "__main__":
    B, D, H = 16, 32, 64   # batch, data_dim, hidden_dim (data_dim % 2 == 0)

    key = jax.random.PRNGKey(0)
    kx, k1, k2, k3, k4, kb1, kb2, kb3, kb4 = jax.random.split(key, 9)

    x = jax.random.normal(kx, (B, D), dtype=jnp.float32)
    logdet = jnp.zeros((B,), dtype=jnp.float32)

    # Alternating NICE mask over the feature dimension.
    mask = (jnp.arange(D) % 2).astype(jnp.float32).reshape(1, D)

    # Deterministic synthetic parameters (PyTorch-Linear-like scale).
    def init_w(k, fan_in, fan_out):
        bound = 1.0 / jnp.sqrt(fan_in)
        return jax.random.uniform(k, (fan_in, fan_out), jnp.float32, -bound, bound)

    params = {
        "w1": init_w(k1, D, H), "b1": init_w(kb1, D, H)[0:1, :] * 0.1,
        "w2": init_w(k2, H, H), "b2": init_w(kb2, H, H)[0:1, :] * 0.1,
        "w3": init_w(k3, H, H), "b3": init_w(kb3, H, H)[0:1, :] * 0.1,
        "w4": init_w(k4, H, D), "b4": init_w(kb4, H, D)[0:1, :] * 0.1,
    }

    # Forward pass through the Pallas kernel.
    y, ld = coupling_layer(x, logdet, mask, params, invert=False)
    y = jax.block_until_ready(y)

    # Check against a pure-JAX reference using the same bf16-operand matmul
    # policy (the kernel intentionally trades ~0.5% f32 fidelity for MXU rate).
    y_ref, _ = _reference(x, logdet, mask, params, invert=False, bf16_matmul=True)
    assert jnp.allclose(y, y_ref, atol=1e-4, rtol=1e-4), "forward mismatch"

    # Invert should recover x (additive coupling cancels exactly: the MLP sees
    # the identical masked input in both directions).
    x_rec, _ = coupling_layer(y, logdet, mask, params, invert=True)
    x_rec = jax.block_until_ready(x_rec)
    assert jnp.allclose(x_rec, x, atol=1e-4, rtol=1e-4), "inverse mismatch"

    print("KERNEL_OK")
</pallas_src>

<mosaic_0001>
module attributes {stable_mosaic.version = 11 : i64} {
  func.func @_coupling_kernel(%arg0: i32, %arg1: memref<16x128xf32, #tpu.memory_space<vmem>>, %arg2: memref<1x128xf32, #tpu.memory_space<vmem>>, %arg3: memref<128x128xbf16, #tpu.memory_space<vmem>>, %arg4: memref<1x128xf32, #tpu.memory_space<vmem>>, %arg5: memref<128x128xbf16, #tpu.memory_space<vmem>>, %arg6: memref<1x128xf32, #tpu.memory_space<vmem>>, %arg7: memref<128x128xbf16, #tpu.memory_space<vmem>>, %arg8: memref<1x128xf32, #tpu.memory_space<vmem>>, %arg9: memref<128x128xbf16, #tpu.memory_space<vmem>>, %arg10: memref<1x128xf32, #tpu.memory_space<vmem>>, %arg11: memref<16x128xf32, #tpu.memory_space<vmem>>) attributes {dimension_semantics = [#tpu.dimension_semantics<parallel>], iteration_bounds = array<i64: 1>, scalar_prefetch = 0 : i64, scratch_operands = 0 : i64, tpu.core_type = #tpu.core_type<tc>, window_params = [{transform_indices = @transform_0, window_bounds = array<i64: 16, 128>}, {pipeline_mode = #tpu.pipeline_mode<synchronous>, transform_indices = @transform_1, window_bounds = array<i64: 1, 128>}, {pipeline_mode = #tpu.pipeline_mode<synchronous>, transform_indices = @transform_2, window_bounds = array<i64: 128, 128>}, {pipeline_mode = #tpu.pipeline_mode<synchronous>, transform_indices = @transform_3, window_bounds = array<i64: 1, 128>}, {pipeline_mode = #tpu.pipeline_mode<synchronous>, transform_indices = @transform_4, window_bounds = array<i64: 128, 128>}, {pipeline_mode = #tpu.pipeline_mode<synchronous>, transform_indices = @transform_5, window_bounds = array<i64: 1, 128>}, {pipeline_mode = #tpu.pipeline_mode<synchronous>, transform_indices = @transform_6, window_bounds = array<i64: 128, 128>}, {pipeline_mode = #tpu.pipeline_mode<synchronous>, transform_indices = @transform_7, window_bounds = array<i64: 1, 128>}, {pipeline_mode = #tpu.pipeline_mode<synchronous>, transform_indices = @transform_8, window_bounds = array<i64: 128, 128>}, {pipeline_mode = #tpu.pipeline_mode<synchronous>, transform_indices = @transform_9, window_bounds = array<i64: 1, 128>}, {transform_indices = @transform_10, window_bounds = array<i64: 16, 128>}]} {
    %c0 = arith.constant 0 : index
    %c0_0 = arith.constant 0 : index
    %0 = vector.load %arg1[%c0, %c0_0] : memref<16x128xf32, #tpu.memory_space<vmem>>, vector<16x128xf32>
    %c0_1 = arith.constant 0 : index
    %c0_2 = arith.constant 0 : index
    %1 = vector.load %arg2[%c0_1, %c0_2] : memref<1x128xf32, #tpu.memory_space<vmem>>, vector<1x128xf32>
    %cst = arith.constant 1.000000e+00 : f32
    %2 = vector.broadcast %cst : f32 to vector<1x128xf32>
    %3 = arith.subf %2, %1 : vector<1x128xf32>
    %4 = vector.broadcast %1 : vector<1x128xf32> to vector<16x128xf32>
    %5 = arith.mulf %4, %0 : vector<16x128xf32>
    %6 = arith.truncf %5 : vector<16x128xf32> to vector<16x128xbf16>
    %c0_3 = arith.constant 0 : index
    %c0_4 = arith.constant 0 : index
    %7 = vector.load %arg3[%c0_3, %c0_4] : memref<128x128xbf16, #tpu.memory_space<vmem>>, vector<128x128xbf16>
    %cst_5 = arith.constant dense<0.000000e+00> : vector<16x128xf32>
    %8 = tpu.matmul %6, %7, %cst_5 {dimension_numbers = #tpu.dot_dimension_numbers<[1], [0], [0], [1], [0, 0, 1, 1], [], []>} : vector<16x128xbf16>, vector<128x128xbf16>, vector<16x128xf32> -> vector<16x128xf32>
    %c0_6 = arith.constant 0 : index
    %c0_7 = arith.constant 0 : index
    %9 = vector.load %arg4[%c0_6, %c0_7] : memref<1x128xf32, #tpu.memory_space<vmem>>, vector<1x128xf32>
    %10 = vector.broadcast %9 : vector<1x128xf32> to vector<16x128xf32>
    %11 = arith.addf %8, %10 : vector<16x128xf32>
    %cst_8 = arith.constant 2.000000e-01 : f32
    %12 = vector.broadcast %cst_8 : f32 to vector<16x128xf32>
    %13 = arith.mulf %12, %11 : vector<16x128xf32>
    %14 = arith.maximumf %11, %13 : vector<16x128xf32>
    %15 = arith.truncf %14 : vector<16x128xf32> to vector<16x128xbf16>
    %c0_9 = arith.constant 0 : index
    %c0_10 = arith.constant 0 : index
    %16 = vector.load %arg5[%c0_9, %c0_10] : memref<128x128xbf16, #tpu.memory_space<vmem>>, vector<128x128xbf16>
    %cst_11 = arith.constant dense<0.000000e+00> : vector<16x128xf32>
    %17 = tpu.matmul %15, %16, %cst_11 {dimension_numbers = #tpu.dot_dimension_numbers<[1], [0], [0], [1], [0, 0, 1, 1], [], []>} : vector<16x128xbf16>, vector<128x128xbf16>, vector<16x128xf32> -> vector<16x128xf32>
    %c0_12 = arith.constant 0 : index
    %c0_13 = arith.constant 0 : index
    %18 = vector.load %arg6[%c0_12, %c0_13] : memref<1x128xf32, #tpu.memory_space<vmem>>, vector<1x128xf32>
    %19 = vector.broadcast %18 : vector<1x128xf32> to vector<16x128xf32>
    %20 = arith.addf %17, %19 : vector<16x128xf32>
    %cst_14 = arith.constant 2.000000e-01 : f32
    %21 = vector.broadcast %cst_14 : f32 to vector<16x128xf32>
    %22 = arith.mulf %21, %20 : vector<16x128xf32>
    %23 = arith.maximumf %20, %22 : vector<16x128xf32>
    %24 = arith.truncf %23 : vector<16x128xf32> to vector<16x128xbf16>
    %c0_15 = arith.constant 0 : index
    %c0_16 = arith.constant 0 : index
    %25 = vector.load %arg7[%c0_15, %c0_16] : memref<128x128xbf16, #tpu.memory_space<vmem>>, vector<128x128xbf16>
    %cst_17 = arith.constant dense<0.000000e+00> : vector<16x128xf32>
    %26 = tpu.matmul %24, %25, %cst_17 {dimension_numbers = #tpu.dot_dimension_numbers<[1], [0], [0], [1], [0, 0, 1, 1], [], []>} : vector<16x128xbf16>, vector<128x128xbf16>, vector<16x128xf32> -> vector<16x128xf32>
    %c0_18 = arith.constant 0 : index
    %c0_19 = arith.constant 0 : index
    %27 = vector.load %arg8[%c0_18, %c0_19] : memref<1x128xf32, #tpu.memory_space<vmem>>, vector<1x128xf32>
    %28 = vector.broadcast %27 : vector<1x128xf32> to vector<16x128xf32>
    %29 = arith.addf %26, %28 : vector<16x128xf32>
    %cst_20 = arith.constant 2.000000e-01 : f32
    %30 = vector.broadcast %cst_20 : f32 to vector<16x128xf32>
    %31 = arith.mulf %30, %29 : vector<16x128xf32>
    %32 = arith.maximumf %29, %31 : vector<16x128xf32>
    %33 = arith.truncf %32 : vector<16x128xf32> to vector<16x128xbf16>
    %c0_21 = arith.constant 0 : index
    %c0_22 = arith.constant 0 : index
    %34 = vector.load %arg9[%c0_21, %c0_22] : memref<128x128xbf16, #tpu.memory_space<vmem>>, vector<128x128xbf16>
    %cst_23 = arith.constant dense<0.000000e+00> : vector<16x128xf32>
    %35 = tpu.matmul %33, %34, %cst_23 {dimension_numbers = #tpu.dot_dimension_numbers<[1], [0], [0], [1], [0, 0, 1, 1], [], []>} : vector<16x128xbf16>, vector<128x128xbf16>, vector<16x128xf32> -> vector<16x128xf32>
    %c0_24 = arith.constant 0 : index
    %c0_25 = arith.constant 0 : index
    %36 = vector.load %arg10[%c0_24, %c0_25] : memref<1x128xf32, #tpu.memory_space<vmem>>, vector<1x128xf32>
    %37 = vector.broadcast %36 : vector<1x128xf32> to vector<16x128xf32>
    %38 = arith.addf %35, %37 : vector<16x128xf32>
    %39 = vector.broadcast %3 : vector<1x128xf32> to vector<16x128xf32>
    %40 = arith.mulf %38, %39 : vector<16x128xf32>
    %41 = arith.addf %0, %40 : vector<16x128xf32>
    %c0_26 = arith.constant 0 : index
    %c0_27 = arith.constant 0 : index
    %42 = vector.load %arg11[%c0_26, %c0_27] : memref<16x128xf32, #tpu.memory_space<vmem>>, vector<16x128xf32>
    tpu.vector_store %arg11[%c0_26, %c0_27], %41 {strides = array<i32>} : memref<16x128xf32, #tpu.memory_space<vmem>>, vector<16x128xf32>,
    return
  }
  func.func @transform_0(%arg0: i32) -> (i32, i32) {
    %c0_i32 = arith.constant 0 : i32
    %c0_i32_0 = arith.constant 0 : i32
    return %arg0, %c0_i32 : i32, i32
  }
  func.func @transform_1(%arg0: i32) -> (i32, i32) {
    %c0_i32 = arith.constant 0 : i32
    %c0_i32_0 = arith.constant 0 : i32
    %c0_i32_1 = arith.constant 0 : i32
    return %c0_i32, %c0_i32_0 : i32, i32
  }
  func.func @transform_2(%arg0: i32) -> (i32, i32) {
    %c0_i32 = arith.constant 0 : i32
    %c0_i32_0 = arith.constant 0 : i32
    %c0_i32_1 = arith.constant 0 : i32
    return %c0_i32, %c0_i32_0 : i32, i32
  }
  func.func @transform_3(%arg0: i32) -> (i32, i32) {
    %c0_i32 = arith.constant 0 : i32
    %c0_i32_0 = arith.constant 0 : i32
    %c0_i32_1 = arith.constant 0 : i32
    return %c0_i32, %c0_i32_0 : i32, i32
  }
  func.func @transform_4(%arg0: i32) -> (i32, i32) {
    %c0_i32 = arith.constant 0 : i32
    %c0_i32_0 = arith.constant 0 : i32
    %c0_i32_1 = arith.constant 0 : i32
    return %c0_i32, %c0_i32_0 : i32, i32
  }
  func.func @transform_5(%arg0: i32) -> (i32, i32) {
    %c0_i32 = arith.constant 0 : i32
    %c0_i32_0 = arith.constant 0 : i32
    %c0_i32_1 = arith.constant 0 : i32
    return %c0_i32, %c0_i32_0 : i32, i32
  }
  func.func @transform_6(%arg0: i32) -> (i32, i32) {
    %c0_i32 = arith.constant 0 : i32
    %c0_i32_0 = arith.constant 0 : i32
    %c0_i32_1 = arith.constant 0 : i32
    return %c0_i32, %c0_i32_0 : i32, i32
  }
  func.func @transform_7(%arg0: i32) -> (i32, i32) {
    %c0_i32 = arith.constant 0 : i32
    %c0_i32_0 = arith.constant 0 : i32
    %c0_i32_1 = arith.constant 0 : i32
    return %c0_i32, %c0_i32_0 : i32, i32
  }
  func.func @transform_8(%arg0: i32) -> (i32, i32) {
    %c0_i32 = arith.constant 0 : i32
    %c0_i32_0 = arith.constant 0 : i32
    %c0_i32_1 = arith.constant 0 : i32
    return %c0_i32, %c0_i32_0 : i32, i32
  }
  func.func @transform_9(%arg0: i32) -> (i32, i32) {
    %c0_i32 = arith.constant 0 : i32
    %c0_i32_0 = arith.constant 0 : i32
    %c0_i32_1 = arith.constant 0 : i32
    return %c0_i32, %c0_i32_0 : i32, i32
  }
  func.func @transform_10(%arg0: i32) -> (i32, i32) {
    %c0_i32 = arith.constant 0 : i32
    %c0_i32_0 = arith.constant 0 : i32
    return %arg0, %c0_i32 : i32, i32
  }
}

</mosaic_0001>

<llo_original>
// kernel: tpu_custom_call.1
$region0: #{tpu_custom_call.1}
  #allocation0 [shape = 'u32[]', space=smem, size = 0x4, offset = 0x4, fixed_abs, tag = 'smem constant byte address 0x4 - core index']
  #allocation1 [shape = 'u32[144,128]{1,0:T(1,128)}', space=vmem, size = 0x12000, scoped, tag = 'internal scratch']
  %s0 = inlined_call_operand.hbm [shape: f32[16,128], index: 0, kind: input, shape index: {}]
  %s1 = inlined_call_operand.vmem [shape: f32[1,128], index: 1, kind: input, shape index: {}]
  %s2 = inlined_call_operand.hbm [shape: bf16[128,128], index: 2, kind: input, shape index: {}]
  %s3 = inlined_call_operand.vmem [shape: f32[1,128], index: 3, kind: input, shape index: {}]
  %s4 = inlined_call_operand.hbm [shape: bf16[128,128], index: 4, kind: input, shape index: {}]
  %s5 = inlined_call_operand.vmem [shape: f32[1,128], index: 5, kind: input, shape index: {}]
  %s6 = inlined_call_operand.hbm [shape: bf16[128,128], index: 6, kind: input, shape index: {}]
  %s7 = inlined_call_operand.vmem [shape: f32[1,128], index: 7, kind: input, shape index: {}]
  %s8 = inlined_call_operand.hbm [shape: bf16[128,128], index: 8, kind: input, shape index: {}]
  %s9 = inlined_call_operand.vmem [shape: f32[1,128], index: 9, kind: input, shape index: {}]
  %s10 = inlined_call_operand.hbm [shape: f32[16,128], index: 10, kind: output, shape index: {}]
  %s11 = sld [smem:[#allocation0]]
  $region70: #{tpu_custom_call.1} parent=0
    _
  %s13 = ssub.s32 1, %s11
  %s14 = scalar_select 0, %s13, %s11
  $region1: #{tpu_custom_call.1} parent=0
    #allocation2 [shape = 'u8[8192]{0}', space=vmem, size = 0x2000, scoped, tag = 'input window, operand 0, single buffered']
    #allocation3 [shape = 's32[1]{0}', space=sflag, size = 0x4, scoped, tag = 'scoped memory for tpu_custom_call.1']
    #allocation4 [shape = 's32[1]{0}', space=sflag, size = 0x4, scoped, tag = 'scoped memory for tpu_custom_call.1']
    #allocation5 [shape = 'u8[32768]{0}', space=vmem, size = 0x8000, scoped, tag = 'input window, operand 2, single buffered']
    #allocation6 [shape = 's32[1]{0}', space=sflag, size = 0x4, scoped, tag = 'scoped memory for tpu_custom_call.1']
    #allocation7 [shape = 'u8[32768]{0}', space=vmem, size = 0x8000, scoped, tag = 'input window, operand 4, single buffered']
    #allocation8 [shape = 'u8[32768]{0}', space=vmem, size = 0x8000, scoped, tag = 'input window, operand 6, single buffered']
    #allocation9 [shape = 's32[1]{0}', space=sflag, size = 0x4, scoped, tag = 'scoped memory for tpu_custom_call.1']
    #allocation10 [shape = 'u8[32768]{0}', space=vmem, size = 0x8000, scoped, tag = 'input window, operand 8, single buffered']
    #allocation11 [shape = 'u8[8192]{0}', space=vmem, size = 0x2000, scoped, tag = 'output window, operand 0, single buffered']
    %15 = vsyncpa [#allocation3], 0
    %16 = vsyncpa [#allocation6], 0
    %17 = vsyncpa [#allocation9], 0
    %18 = vsyncpa [#allocation4], 0
    // Predicated region
    $region2: #{tpu_custom_call.1} parent=1 // pred_check
      _
    $region3: #{tpu_custom_call.1} parent=1 // pred_check_branch
      %20 = sbr.rel (0) target = $region5
    $region4: #{tpu_custom_call.1} parent=1 // pred_region
      %s22 = ssub.s32 256, 256
      %23 = vsyncadd [#allocation3], %s22
      %s24 = sshll.u32 [#allocation2], 4
      %s25 = int_to_ptr.vmem [resolvable:$true] %s24
      %30 = dma.hbm_to_vmem [thread:$0]  %s0, 256, %s25, [#allocation3], 128, 128, 8
    $region5: #{tpu_custom_call.1} parent=1 // pred_fallthru
      _
    // Predicated region
    $region6: #{tpu_custom_call.1} parent=1 // pred_check
      _
    $region7: #{tpu_custom_call.1} parent=1 // pred_check_branch
      %32 = sbr.rel (0) target = $region9
    $region8: #{tpu_custom_call.1} parent=1 // pred_region
      _
    $region9: #{tpu_custom_call.1} parent=1 // pred_fallthru
      _
    // Predicated region
    $region10: #{tpu_custom_call.1} parent=1 // pred_check
      _
    $region11: #{tpu_custom_call.1} parent=1 // pred_check_branch
      %34 = sbr.rel (0) target = $region13
    $region12: #{tpu_custom_call.1} parent=1 // pred_region
      %s36 = ssub.s32 1024, 1024
      %37 = vsyncadd [#allocation6], %s36
      %s38 = sshll.u32 [#allocation5], 4
      %s39 = int_to_ptr.vmem [resolvable:$true] %s38
      %44 = dma.hbm_to_vmem [thread:$0]  %s2, 1024, %s39, [#allocation6], 64, 64, 4
    $region13: #{tpu_custom_call.1} parent=1 // pred_fallthru
      _
    // Predicated region
    $region14: #{tpu_custom_call.1} parent=1 // pred_check
      _
    $region15: #{tpu_custom_call.1} parent=1 // pred_check_branch
      %46 = sbr.rel (0) target = $region17
    $region16: #{tpu_custom_call.1} parent=1 // pred_region
      _
    $region17: #{tpu_custom_call.1} parent=1 // pred_fallthru
      _
    // Predicated region
    $region18: #{tpu_custom_call.1} parent=1 // pred_check
      _
    $region19: #{tpu_custom_call.1} parent=1 // pred_check_branch
      %48 = sbr.rel (0) target = $region21
    $region20: #{tpu_custom_call.1} parent=1 // pred_region
      %s50 = ssub.s32 1024, 1024
      %51 = vsyncadd [#allocation6], %s50
      %s52 = sshll.u32 [#allocation7], 4
      %s53 = int_to_ptr.vmem [resolvable:$true] %s52
      %58 = dma.hbm_to_vmem [thread:$0]  %s4, 1024, %s53, [#allocation6], 64, 64, 4
    $region21: #{tpu_custom_call.1} parent=1 // pred_fallthru
      _
    // Predicated region
    $region22: #{tpu_custom_call.1} parent=1 // pred_check
      _
    $region23: #{tpu_custom_call.1} parent=1 // pred_check_branch
      %60 = sbr.rel (0) target = $region25
    $region24: #{tpu_custom_call.1} parent=1 // pred_region
      _
    $region25: #{tpu_custom_call.1} parent=1 // pred_fallthru
      _
    // Predicated region
    $region26: #{tpu_custom_call.1} parent=1 // pred_check
      _
    $region27: #{tpu_custom_call.1} parent=1 // pred_check_branch
      %62 = sbr.rel (0) target = $region29
    $region28: #{tpu_custom_call.1} parent=1 // pred_region
      %s64 = ssub.s32 1024, 1024
      %65 = vsyncadd [#allocation9], %s64
      %s66 = sshll.u32 [#allocation8], 4
      %s67 = int_to_ptr.vmem [resolvable:$true] %s66
      %72 = dma.hbm_to_vmem [thread:$0]  %s6, 1024, %s67, [#allocation9], 64, 64, 4
    $region29: #{tpu_custom_call.1} parent=1 // pred_fallthru
      _
    // Predicated region
    $region30: #{tpu_custom_call.1} parent=1 // pred_check
      _
    $region31: #{tpu_custom_call.1} parent=1 // pred_check_branch
      %74 = sbr.rel (0) target = $region33
    $region32: #{tpu_custom_call.1} parent=1 // pred_region
      _
    $region33: #{tpu_custom_call.1} parent=1 // pred_fallthru
      _
    // Predicated region
    $region34: #{tpu_custom_call.1} parent=1 // pred_check
      _
    $region35: #{tpu_custom_call.1} parent=1 // pred_check_branch
      %76 = sbr.rel (0) target = $region37
    $region36: #{tpu_custom_call.1} parent=1 // pred_region
      %s78 = ssub.s32 1024, 1024
      %79 = vsyncadd [#allocation9], %s78
      %s80 = sshll.u32 [#allocation10], 4
      %s81 = int_to_ptr.vmem [resolvable:$true] %s80
      %86 = dma.hbm_to_vmem [thread:$0]  %s8, 1024, %s81, [#allocation9], 64, 64, 4
    $region37: #{tpu_custom_call.1} parent=1 // pred_fallthru
      _
    // Predicated region
    $region38: #{tpu_custom_call.1} parent=1 // pred_check
      _
    $region39: #{tpu_custom_call.1} parent=1 // pred_check_branch
      %88 = sbr.rel (0) target = $region41
    $region40: #{tpu_custom_call.1} parent=1 // pred_region
      _
    $region41: #{tpu_custom_call.1} parent=1 // pred_fallthru
      _
    // Predicated region
    $region42: #{tpu_custom_call.1} parent=1 // pred_check
      _
    $region43: #{tpu_custom_call.1} parent=1 // pred_check_branch
      %90 = sbr.rel (0) target = $region45
    $region44: #{tpu_custom_call.1} parent=1 // pred_region
      %91 = dma.done [#allocation3], 256
    $region45: #{tpu_custom_call.1} parent=1 // pred_fallthru
      _
    // Predicated region
    $region46: #{tpu_custom_call.1} parent=1 // pred_check
      _
    $region47: #{tpu_custom_call.1} parent=1 // pred_check_branch
      %93 = sbr.rel (0) target = $region49
    $region48: #{tpu_custom_call.1} parent=1 // pred_region
      %94 = dma.done [#allocation6], 1024
    $region49: #{tpu_custom_call.1} parent=1 // pred_fallthru
      _
    // Predicated region
    $region50: #{tpu_custom_call.1} parent=1 // pred_check
      _
    $region51: #{tpu_custom_call.1} parent=1 // pred_check_branch
      %96 = sbr.rel (0) target = $region53
    $region52: #{tpu_custom_call.1} parent=1 // pred_region
      %97 = dma.done [#allocation6], 1024
    $region53: #{tpu_custom_call.1} parent=1 // pred_fallthru
      _
    // Predicated region
    $region54: #{tpu_custom_call.1} parent=1 // pred_check
      _
    $region55: #{tpu_custom_call.1} parent=1 // pred_check_branch
      %99 = sbr.rel (0) target = $region57
    $region56: #{tpu_custom_call.1} parent=1 // pred_region
      %100 = dma.done [#allocation9], 1024
    $region57: #{tpu_custom_call.1} parent=1 // pred_fallthru
      _
    // Predicated region
    $region58: #{tpu_custom_call.1} parent=1 // pred_check
      _
    $region59: #{tpu_custom_call.1} parent=1 // pred_check_branch
      %102 = sbr.rel (0) target = $region61
    $region60: #{tpu_custom_call.1} parent=1 // pred_region
      %103 = dma.done [#allocation9], 1024
    $region61: #{tpu_custom_call.1} parent=1 // pred_fallthru
      _
    %v105 = vld [vmem:[#allocation2] sm:$0xff]
    %v106 = vld [vmem:[#allocation2 + $0x8] sm:$0xff]
    %v107 = vld [vmem:[%s1] sm:$0x1]
    %v108 = vsub.f32 1.0, %v107
    %v110 = vlaneseq
    %v111 = vshrl.u32 %v110, 7
    %v112 = vsub.s32 0, %v111
    %v113 = vrot.slane %v107, %v112
    %v115 = vmul.f32 %v113, %v105
    %v116 = vmul.f32 %v113, %v106
    %v117 = vpack.c.bf16 %v116, %v115
    %v118 = vld [vmem:[#allocation5] sm:$0xf]
    %v119 = vld [vmem:[#allocation5 + $0x4] sm:$0xf]
    %v120 = vld [vmem:[#allocation5 + $0x8] sm:$0xf]
    %v121 = vld [vmem:[#allocation5 + $0xc] sm:$0xf]
    %v122 = vld [vmem:[#allocation5 + $0x10] sm:$0xf]
    %v123 = vld [vmem:[#allocation5 + $0x14] sm:$0xf]
    %v124 = vld [vmem:[#allocation5 + $0x18] sm:$0xf]
    %v125 = vld [vmem:[#allocation5 + $0x1c] sm:$0xf]
    %v126 = vld [vmem:[#allocation5 + $0x20] sm:$0xf]
    %v127 = vld [vmem:[#allocation5 + $0x24] sm:$0xf]
    %v128 = vld [vmem:[#allocation5 + $0x28] sm:$0xf]
    %v129 = vld [vmem:[#allocation5 + $0x2c] sm:$0xf]
    %v130 = vld [vmem:[#allocation5 + $0x30] sm:$0xf]
    %v131 = vld [vmem:[#allocation5 + $0x34] sm:$0xf]
    %v132 = vld [vmem:[#allocation5 + $0x38] sm:$0xf]
    %v133 = vld [vmem:[#allocation5 + $0x3c] sm:$0xf]
    %v134 = vld [vmem:[%s3] sm:$0x1]
    %v136 = vlaneseq
    %v137 = vshrl.u32 %v136, 7
    %v138 = vsub.s32 0, %v137
    %v139 = vrot.slane %v134, %v138
    %v157 = vunpack.c.l.b16 %v118
    %v158 = vunpack.c.l.b16 %v119
    %v159 = vunpack.c.l.b16 %v120
    %v160 = vunpack.c.l.b16 %v121
    %v161 = vunpack.c.l.b16 %v122
    %v162 = vunpack.c.l.b16 %v123
    %v163 = vunpack.c.l.b16 %v124
    %v164 = vunpack.c.l.b16 %v125
    %v165 = vunpack.c.l.b16 %v126
    %v166 = vunpack.c.l.b16 %v127
    %v167 = vunpack.c.l.b16 %v128
    %v168 = vunpack.c.l.b16 %v129
    %v169 = vunpack.c.l.b16 %v130
    %v170 = vunpack.c.l.b16 %v131
    %v171 = vunpack.c.l.b16 %v132
    %v172 = vunpack.c.l.b16 %v133
    %v173 = vpack.c.b16 %v158, %v157
    %v174 = vpack.c.b16 %v160, %v159
    %v175 = vpack.c.b16 %v162, %v161
    %v176 = vpack.c.b16 %v164, %v163
    %v177 = vpack.c.b16 %v166, %v165
    %v178 = vpack.c.b16 %v168, %v167
    %v179 = vpack.c.b16 %v170, %v169
    %v180 = vpack.c.b16 %v172, %v171
    %189 = vmatprep.subr.bf16.mxu0 0
    %190 = vmatpush1.bf16.msra.mxu0 %v180
    %191 = vmatprep.subr.bf16.mxu0 0
    %192 = vmatpush1.bf16.msra.mxu0 %v179
    %193 = vmatprep.subr.bf16.mxu0 0
    %194 = vmatpush1.bf16.msra.mxu0 %v178
    %195 = vmatprep.subr.bf16.mxu0 0
    %196 = vmatpush1.bf16.msra.mxu0 %v177
    %197 = vmatprep.subr.bf16.mxu0 0
    %198 = vmatpush1.bf16.msra.mxu0 %v176
    %199 = vmatprep.subr.bf16.mxu0 0
    %200 = vmatpush1.bf16.msra.mxu0 %v175
    %201 = vmatprep.subr.bf16.mxu0 0
    %202 = vmatpush1.bf16.msra.mxu0 %v174
    %203 = vmatprep.subr.bf16.mxu0 0
    %204 = vmatpush1.bf16.msra.mxu0 %v173
    %205 = vmatprep.subr.bf16.mxu0 0
    %206 = vmatpush2.bf16.msra.mxu0 0
    %207 = vmatprep.subr.bf16.mxu0 0
    %208 = vmatpush2.bf16.msra.mxu0 0
    %209 = vmatprep.subr.bf16.mxu0 0
    %210 = vmatpush2.bf16.msra.mxu0 0
    %211 = vmatprep.subr.bf16.mxu0 0
    %212 = vmatpush2.bf16.msra.mxu0 0
    %213 = vmatprep.subr.bf16.mxu0 0
    %214 = vmatpush2.bf16.msra.mxu0 0
    %215 = vmatprep.subr.bf16.mxu0 0
    %216 = vmatpush2.bf16.msra.mxu0 0
    %217 = vmatprep.subr.bf16.mxu0 0
    %218 = vmatpush2.bf16.msra.mxu0 0
    %219 = vmatprep.subr.bf16.mxu0 0
    %220 = vmatpush2.bf16.msra.mxu0 0
    %221 = vmatprep.mubr.bf16.mxu0 0
    %222 = vmatmul.mubr.bf16.gmra.mxu0 %v117
    %v223 = vpop.f32.mrf.mxu0
    %v224 = vadd.f32 %v139, %v223
    %v225 = vpop.f32.mrf.mxu0
    %v226 = vpop.f32.mrf.mxu0
    %v227 = vadd.f32 %v139, %v226
    %v228 = vpop.f32.mrf.mxu0
    %229 = vdwg.mxu0
    %v230 = vmul.f32 %v224, 0.2
    %v231 = vmul.f32 %v227, 0.2
    %v232 = vmax.f32 %v224, %v230
    %v233 = vmax.f32 %v227, %v231
    %v234 = vpack.c.bf16 %v233, %v232
    %v235 = vld [vmem:[#allocation7] sm:$0xf]
    %v236 = vld [vmem:[#allocation7 + $0x4] sm:$0xf]
    %v237 = vld [vmem:[#allocation7 + $0x8] sm:$0xf]
    %v238 = vld [vmem:[#allocation7 + $0xc] sm:$0xf]
    %v239 = vld [vmem:[#allocation7 + $0x10] sm:$0xf]
    %v240 = vld [vmem:[#allocation7 + $0x14] sm:$0xf]
    %v241 = vld [vmem:[#allocation7 + $0x18] sm:$0xf]
    %v242 = vld [vmem:[#allocation7 + $0x1c] sm:$0xf]
    %v243 = vld [vmem:[#allocation7 + $0x20] sm:$0xf]
    %v244 = vld [vmem:[#allocation7 + $0x24] sm:$0xf]
    %v245 = vld [vmem:[#allocation7 + $0x28] sm:$0xf]
    %v246 = vld [vmem:[#allocation7 + $0x2c] sm:$0xf]
    %v247 = vld [vmem:[#allocation7 + $0x30] sm:$0xf]
    %v248 = vld [vmem:[#allocation7 + $0x34] sm:$0xf]
    %v249 = vld [vmem:[#allocation7 + $0x38] sm:$0xf]
    %v250 = vld [vmem:[#allocation7 + $0x3c] sm:$0xf]
    %v251 = vld [vmem:[%s5] sm:$0x1]
    %v253 = vlaneseq
    %v254 = vshrl.u32 %v253, 7
    %v255 = vsub.s32 0, %v254
    %v256 = vrot.slane %v251, %v255
    %v274 = vunpack.c.l.b16 %v235
    %v275 = vunpack.c.l.b16 %v236
    %v276 = vunpack.c.l.b16 %v237
    %v277 = vunpack.c.l.b16 %v238
    %v278 = vunpack.c.l.b16 %v239
    %v279 = vunpack.c.l.b16 %v240
    %v280 = vunpack.c.l.b16 %v241
    %v281 = vunpack.c.l.b16 %v242
    %v282 = vunpack.c.l.b16 %v243
    %v283 = vunpack.c.l.b16 %v244
    %v284 = vunpack.c.l.b16 %v245
    %v285 = vunpack.c.l.b16 %v246
    %v286 = vunpack.c.l.b16 %v247
    %v287 = vunpack.c.l.b16 %v248
    %v288 = vunpack.c.l.b16 %v249
    %v289 = vunpack.c.l.b16 %v250
    %v290 = vpack.c.b16 %v275, %v274
    %v291 = vpack.c.b16 %v277, %v276
    %v292 = vpack.c.b16 %v279, %v278
    %v293 = vpack.c.b16 %v281, %v280
    %v294 = vpack.c.b16 %v283, %v282
    %v295 = vpack.c.b16 %v285, %v284
    %v296 = vpack.c.b16 %v287, %v286
    %v297 = vpack.c.b16 %v289, %v288
    %306 = vmatprep.subr.bf16.mxu0 0
    %307 = vmatpush1.bf16.msra.mxu0 %v297
    %308 = vmatprep.subr.bf16.mxu0 0
    %309 = vmatpush1.bf16.msra.mxu0 %v296
    %310 = vmatprep.subr.bf16.mxu0 0
    %311 = vmatpush1.bf16.msra.mxu0 %v295
    %312 = vmatprep.subr.bf16.mxu0 0
    %313 = vmatpush1.bf16.msra.mxu0 %v294
    %314 = vmatprep.subr.bf16.mxu0 0
    %315 = vmatpush1.bf16.msra.mxu0 %v293
    %316 = vmatprep.subr.bf16.mxu0 0
    %317 = vmatpush1.bf16.msra.mxu0 %v292
    %318 = vmatprep.subr.bf16.mxu0 0
    %319 = vmatpush1.bf16.msra.mxu0 %v291
    %320 = vmatprep.subr.bf16.mxu0 0
    %321 = vmatpush1.bf16.msra.mxu0 %v290
    %322 = vmatprep.subr.bf16.mxu0 0
    %323 = vmatpush2.bf16.msra.mxu0 0
    %324 = vmatprep.subr.bf16.mxu0 0
    %325 = vmatpush2.bf16.msra.mxu0 0
    %326 = vmatprep.subr.bf16.mxu0 0
    %327 = vmatpush2.bf16.msra.mxu0 0
    %328 = vmatprep.subr.bf16.mxu0 0
    %329 = vmatpush2.bf16.msra.mxu0 0
    %330 = vmatprep.subr.bf16.mxu0 0
    %331 = vmatpush2.bf16.msra.mxu0 0
    %332 = vmatprep.subr.bf16.mxu0 0
    %333 = vmatpush2.bf16.msra.mxu0 0
    %334 = vmatprep.subr.bf16.mxu0 0
    %335 = vmatpush2.bf16.msra.mxu0 0
    %336 = vmatprep.subr.bf16.mxu0 0
    %337 = vmatpush2.bf16.msra.mxu0 0
    %338 = vmatprep.mubr.bf16.mxu0 0
    %339 = vmatmul.mubr.bf16.gmra.mxu0 %v234
    %v340 = vpop.f32.mrf.mxu0
    %v341 = vadd.f32 %v256, %v340
    %v342 = vpop.f32.mrf.mxu0
    %v343 = vpop.f32.mrf.mxu0
    %v344 = vadd.f32 %v256, %v343
    %v345 = vpop.f32.mrf.mxu0
    %346 = vdwg.mxu0
    %v347 = vmul.f32 %v341, 0.2
    %v348 = vmul.f32 %v344, 0.2
    %v349 = vmax.f32 %v341, %v347
    %v350 = vmax.f32 %v344, %v348
    %v351 = vpack.c.bf16 %v350, %v349
    %v352 = vld [vmem:[#allocation8] sm:$0xf]
    %v353 = vld [vmem:[#allocation8 + $0x4] sm:$0xf]
    %v354 = vld [vmem:[#allocation8 + $0x8] sm:$0xf]
    %v355 = vld [vmem:[#allocation8 + $0xc] sm:$0xf]
    %v356 = vld [vmem:[#allocation8 + $0x10] sm:$0xf]
    %v357 = vld [vmem:[#allocation8 + $0x14] sm:$0xf]
    %v358 = vld [vmem:[#allocation8 + $0x18] sm:$0xf]
    %v359 = vld [vmem:[#allocation8 + $0x1c] sm:$0xf]
    %v360 = vld [vmem:[#allocation8 + $0x20] sm:$0xf]
    %v361 = vld [vmem:[#allocation8 + $0x24] sm:$0xf]
    %v362 = vld [vmem:[#allocation8 + $0x28] sm:$0xf]
    %v363 = vld [vmem:[#allocation8 + $0x2c] sm:$0xf]
    %v364 = vld [vmem:[#allocation8 + $0x30] sm:$0xf]
    %v365 = vld [vmem:[#allocation8 + $0x34] sm:$0xf]
    %v366 = vld [vmem:[#allocation8 + $0x38] sm:$0xf]
    %v367 = vld [vmem:[#allocation8 + $0x3c] sm:$0xf]
    %v368 = vld [vmem:[%s7] sm:$0x1]
    %v370 = vlaneseq
    %v371 = vshrl.u32 %v370, 7
    %v372 = vsub.s32 0, %v371
    %v373 = vrot.slane %v368, %v372
    %v391 = vunpack.c.l.b16 %v352
    %v392 = vunpack.c.l.b16 %v353
    %v393 = vunpack.c.l.b16 %v354
    %v394 = vunpack.c.l.b16 %v355
    %v395 = vunpack.c.l.b16 %v356
    %v396 = vunpack.c.l.b16 %v357
    %v397 = vunpack.c.l.b16 %v358
    %v398 = vunpack.c.l.b16 %v359
    %v399 = vunpack.c.l.b16 %v360
    %v400 = vunpack.c.l.b16 %v361
    %v401 = vunpack.c.l.b16 %v362
    %v402 = vunpack.c.l.b16 %v363
    %v403 = vunpack.c.l.b16 %v364
    %v404 = vunpack.c.l.b16 %v365
    %v405 = vunpack.c.l.b16 %v366
    %v406 = vunpack.c.l.b16 %v367
    %v407 = vpack.c.b16 %v392, %v391
    %v408 = vpack.c.b16 %v394, %v393
    %v409 = vpack.c.b16 %v396, %v395
    %v410 = vpack.c.b16 %v398, %v397
    %v411 = vpack.c.b16 %v400, %v399
    %v412 = vpack.c.b16 %v402, %v401
    %v413 = vpack.c.b16 %v404, %v403
    %v414 = vpack.c.b16 %v406, %v405
    %423 = vmatprep.subr.bf16.mxu0 0
    %424 = vmatpush1.bf16.msra.mxu0 %v414
    %425 = vmatprep.subr.bf16.mxu0 0
    %426 = vmatpush1.bf16.msra.mxu0 %v413
    %427 = vmatprep.subr.bf16.mxu0 0
    %428 = vmatpush1.bf16.msra.mxu0 %v412
    %429 = vmatprep.subr.bf16.mxu0 0
    %430 = vmatpush1.bf16.msra.mxu0 %v411
    %431 = vmatprep.subr.bf16.mxu0 0
    %432 = vmatpush1.bf16.msra.mxu0 %v410
    %433 = vmatprep.subr.bf16.mxu0 0
    %434 = vmatpush1.bf16.msra.mxu0 %v409
    %435 = vmatprep.subr.bf16.mxu0 0
    %436 = vmatpush1.bf16.msra.mxu0 %v408
    %437 = vmatprep.subr.bf16.mxu0 0
    %438 = vmatpush1.bf16.msra.mxu0 %v407
    %439 = vmatprep.subr.bf16.mxu0 0
    %440 = vmatpush2.bf16.msra.mxu0 0
    %441 = vmatprep.subr.bf16.mxu0 0
    %442 = vmatpush2.bf16.msra.mxu0 0
    %443 = vmatprep.subr.bf16.mxu0 0
    %444 = vmatpush2.bf16.msra.mxu0 0
    %445 = vmatprep.subr.bf16.mxu0 0
    %446 = vmatpush2.bf16.msra.mxu0 0
    %447 = vmatprep.subr.bf16.mxu0 0
    %448 = vmatpush2.bf16.msra.mxu0 0
    %449 = vmatprep.subr.bf16.mxu0 0
    %450 = vmatpush2.bf16.msra.mxu0 0
    %451 = vmatprep.subr.bf16.mxu0 0
    %452 = vmatpush2.bf16.msra.mxu0 0
    %453 = vmatprep.subr.bf16.mxu0 0
    %454 = vmatpush2.bf16.msra.mxu0 0
    %455 = vmatprep.mubr.bf16.mxu0 0
    %456 = vmatmul.mubr.bf16.gmra.mxu0 %v351
    %v457 = vpop.f32.mrf.mxu0
    %v458 = vadd.f32 %v373, %v457
    %v459 = vpop.f32.mrf.mxu0
    %v460 = vpop.f32.mrf.mxu0
    %v461 = vadd.f32 %v373, %v460
    %v462 = vpop.f32.mrf.mxu0
    %463 = vdwg.mxu0
    %v464 = vmul.f32 %v458, 0.2
    %v465 = vmul.f32 %v461, 0.2
    %v466 = vmax.f32 %v458, %v464
    %v467 = vmax.f32 %v461, %v465
    %v468 = vpack.c.bf16 %v467, %v466
    %v469 = vld [vmem:[#allocation10] sm:$0xf]
    %v470 = vld [vmem:[#allocation10 + $0x4] sm:$0xf]
    %v471 = vld [vmem:[#allocation10 + $0x8] sm:$0xf]
    %v472 = vld [vmem:[#allocation10 + $0xc] sm:$0xf]
    %v473 = vld [vmem:[#allocation10 + $0x10] sm:$0xf]
    %v474 = vld [vmem:[#allocation10 + $0x14] sm:$0xf]
    %v475 = vld [vmem:[#allocation10 + $0x18] sm:$0xf]
    %v476 = vld [vmem:[#allocation10 + $0x1c] sm:$0xf]
    %v477 = vld [vmem:[#allocation10 + $0x20] sm:$0xf]
    %v478 = vld [vmem:[#allocation10 + $0x24] sm:$0xf]
    %v479 = vld [vmem:[#allocation10 + $0x28] sm:$0xf]
    %v480 = vld [vmem:[#allocation10 + $0x2c] sm:$0xf]
    %v481 = vld [vmem:[#allocation10 + $0x30] sm:$0xf]
    %v482 = vld [vmem:[#allocation10 + $0x34] sm:$0xf]
    %v483 = vld [vmem:[#allocation10 + $0x38] sm:$0xf]
    %v484 = vld [vmem:[#allocation10 + $0x3c] sm:$0xf]
    %v485 = vld [vmem:[%s9] sm:$0x1]
    %v487 = vlaneseq
    %v488 = vshrl.u32 %v487, 7
    %v489 = vsub.s32 0, %v488
    %v490 = vrot.slane %v485, %v489
    %v508 = vunpack.c.l.b16 %v469
    %v509 = vunpack.c.l.b16 %v470
    %v510 = vunpack.c.l.b16 %v471
    %v511 = vunpack.c.l.b16 %v472
    %v512 = vunpack.c.l.b16 %v473
    %v513 = vunpack.c.l.b16 %v474
    %v514 = vunpack.c.l.b16 %v475
    %v515 = vunpack.c.l.b16 %v476
    %v516 = vunpack.c.l.b16 %v477
    %v517 = vunpack.c.l.b16 %v478
    %v518 = vunpack.c.l.b16 %v479
    %v519 = vunpack.c.l.b16 %v480
    %v520 = vunpack.c.l.b16 %v481
    %v521 = vunpack.c.l.b16 %v482
    %v522 = vunpack.c.l.b16 %v483
    %v523 = vunpack.c.l.b16 %v484
    %v524 = vpack.c.b16 %v509, %v508
    %v525 = vpack.c.b16 %v511, %v510
    %v526 = vpack.c.b16 %v513, %v512
    %v527 = vpack.c.b16 %v515, %v514
    %v528 = vpack.c.b16 %v517, %v516
    %v529 = vpack.c.b16 %v519, %v518
    %v530 = vpack.c.b16 %v521, %v520
    %v531 = vpack.c.b16 %v523, %v522
    %540 = vmatprep.subr.bf16.mxu0 0
    %541 = vmatpush1.bf16.msra.mxu0 %v531
    %542 = vmatprep.subr.bf16.mxu0 0
    %543 = vmatpush1.bf16.msra.mxu0 %v530
    %544 = vmatprep.subr.bf16.mxu0 0
    %545 = vmatpush1.bf16.msra.mxu0 %v529
    %546 = vmatprep.subr.bf16.mxu0 0
    %547 = vmatpush1.bf16.msra.mxu0 %v528
    %548 = vmatprep.subr.bf16.mxu0 0
    %549 = vmatpush1.bf16.msra.mxu0 %v527
    %550 = vmatprep.subr.bf16.mxu0 0
    %551 = vmatpush1.bf16.msra.mxu0 %v526
    %552 = vmatprep.subr.bf16.mxu0 0
    %553 = vmatpush1.bf16.msra.mxu0 %v525
    %554 = vmatprep.subr.bf16.mxu0 0
    %555 = vmatpush1.bf16.msra.mxu0 %v524
    %556 = vmatprep.subr.bf16.mxu0 0
    %557 = vmatpush2.bf16.msra.mxu0 0
    %558 = vmatprep.subr.bf16.mxu0 0
    %559 = vmatpush2.bf16.msra.mxu0 0
    %560 = vmatprep.subr.bf16.mxu0 0
    %561 = vmatpush2.bf16.msra.mxu0 0
    %562 = vmatprep.subr.bf16.mxu0 0
    %563 = vmatpush2.bf16.msra.mxu0 0
    %564 = vmatprep.subr.bf16.mxu0 0
    %565 = vmatpush2.bf16.msra.mxu0 0
    %566 = vmatprep.subr.bf16.mxu0 0
    %567 = vmatpush2.bf16.msra.mxu0 0
    %568 = vmatprep.subr.bf16.mxu0 0
    %569 = vmatpush2.bf16.msra.mxu0 0
    %570 = vmatprep.subr.bf16.mxu0 0
    %571 = vmatpush2.bf16.msra.mxu0 0
    %572 = vmatprep.mubr.bf16.mxu0 0
    %573 = vmatmul.mubr.bf16.gmra.mxu0 %v468
    %v574 = vpop.f32.mrf.mxu0
    %v575 = vadd.f32 %v490, %v574
    %v576 = vpop.f32.mrf.mxu0
    %v577 = vpop.f32.mrf.mxu0
    %v578 = vadd.f32 %v490, %v577
    %v579 = vpop.f32.mrf.mxu0
    %580 = vdwg.mxu0
    %v582 = vlaneseq
    %v583 = vshrl.u32 %v582, 7
    %v584 = vsub.s32 0, %v583
    %v585 = vrot.slane %v108, %v584
    %v587 = vmul.f32 %v575, %v585
    %v588 = vmul.f32 %v578, %v585
    %v589 = vadd.f32 %v105, %v587
    %v590 = vadd.f32 %v106, %v588
    %591 = vst [vmem:[#allocation11] sm:$0xff] %v589
    %592 = vst [vmem:[#allocation11 + $0x8] sm:$0xff] %v590
    // Predicated region
    $region62: #{tpu_custom_call.1} parent=1 // pred_check
      _
    $region63: #{tpu_custom_call.1} parent=1 // pred_check_branch
      %594 = sbr.rel (0) target = $region65
    $region64: #{tpu_custom_call.1} parent=1 // pred_region
      %s596 = ssub.s32 256, 256
      %597 = vsyncadd [#allocation4], %s596
      %s598 = sshll.u32 [#allocation11], 4
      %s599 = int_to_ptr.vmem [resolvable:$true] %s598
      %604 = dma.vmem_to_hbm [thread:$0]  %s599, 256, %s10, [#allocation4], 128, 128, 8
    $region65: #{tpu_custom_call.1} parent=1 // pred_fallthru
      _
    // Predicated region
    $region66: #{tpu_custom_call.1} parent=1 // pred_check
      _
    $region67: #{tpu_custom_call.1} parent=1 // pred_check_branch
      %606 = sbr.rel (0) target = $region69
    $region68: #{tpu_custom_call.1} parent=1 // pred_region
      %607 = dma.done [#allocation4], 256
    $region69: #{tpu_custom_call.1} parent=1 // pred_fallthru
      _
    %608 = vsyncpa [#allocation3], 1
    %609 = vsyncpa [#allocation6], 1
    %610 = vsyncpa [#allocation9], 1
    %611 = vsyncpa [#allocation4], 1

</llo_original>
